<compile_context>
chip_gen: v5e
topology: v5e:2x2
jax: 0.10.0
libtpu: 0.0.40
codegen_flags: <defaults>
</compile_context>

<pallas_src>
import functools

import jax
import jax.numpy as jnp
from jax.experimental import pallas as pl
from jax.experimental.pallas import tpu as pltpu


def _round_up(x, m):
    return (x + m - 1) // m * m


def _pick_lane_tile(dim, target):
    """Largest multiple of 128 that divides `dim` and is <= target, else full dim."""
    if dim % 128 != 0:
        return dim
    t = min(max(128, (target // 128) * 128), dim)
    while dim % t:
        t -= 128
    return t


def _usable_vmem_bytes():
    """Per-core VMEM capacity minus ~8 MiB headroom, generation-aware."""
    try:
        cap = int(pltpu.get_tpu_info().vmem_capacity_bytes)
    except Exception:
        cap = 64 << 20  # conservative fallback: assume v7x-sized VMEM
    return max(cap - (8 << 20), 16 << 20)


def _ffn_kernel(x_ref, w1_ref, b1_ref, w2_ref, b2_ref, o_ref, h_ref, acc_ref):
    # x_ref : (tm, d_model)   row tile of tokens
    # w1_ref: (d_model, tk)   column slice of w1 (only consumed when j == 0)
    # b1_ref: (1, d_ff)       resident bias 1
    # w2_ref: (tk, tn)        (reduction, output-column) block of w2
    # b2_ref: (1, d_out)      resident bias 2
    # o_ref : (tm, tn)        output tile
    # h_ref : (tm, d_ff)      VMEM cache of relu(x @ w1 + b1) for this row tile
    # acc_ref:(tm, tn) f32    accumulator over the d_ff reduction
    j = pl.program_id(1)                       # output-column tile
    k = pl.program_id(2)                       # d_ff reduction tile (innermost)
    tk = w2_ref.shape[0]
    tn = w2_ref.shape[1]
    col0 = pl.multiple_of(k * tk, tk)
    out0 = pl.multiple_of(j * tn, tn)

    def _accumulate(h_blk):
        contrib = jnp.dot(h_blk, w2_ref[...], preferred_element_type=jnp.float32)

        @pl.when(k == 0)
        def _():
            acc_ref[...] = contrib             # init = first partial product (no
                                               # separate broadcast/zero store)

        @pl.when(k > 0)
        def _():
            acc_ref[...] += contrib

    # First matmul for this d_ff slice: compute only once per (i, k), i.e. on the
    # first output-column sweep.  Feed the in-register result straight into the
    # second matmul; store it to VMEM only for reuse by the j > 0 sweeps.
    @pl.when(j == 0)
    def _():
        h = jnp.dot(x_ref[...], w1_ref[...], preferred_element_type=jnp.float32)
        h = jnp.maximum(h + b1_ref[:, pl.ds(col0, tk)].astype(jnp.float32), 0.0)
        # dropout == identity (eval mode)
        h_c = h.astype(h_ref.dtype)
        h_ref[:, pl.ds(col0, tk)] = h_c
        _accumulate(h_c)

    @pl.when(j > 0)
    def _():
        _accumulate(h_ref[:, pl.ds(col0, tk)])

    @pl.when(k == pl.num_programs(2) - 1)
    def _():
        o_ref[...] = (acc_ref[...]
                      + b2_ref[:, pl.ds(out0, tn)].astype(jnp.float32)
                      ).astype(o_ref.dtype)


@functools.partial(
    jax.jit,
    static_argnames=("tm", "tn", "tk", "compute_dtype", "min_row_tiles"))
def positionwise_ffn(x, w1, b1, w2, b2, *, tm=512, tn=1024, tk=1024,
                     compute_dtype=None, min_row_tiles=1):
    """x: [B, S, d_model] -> [B, S, d_out] where d_out = w2.shape[1]."""
    B, S, d_model = x.shape
    d_ff = w1.shape[1]
    d_out = w2.shape[1]
    M = B * S
    out_dtype = x.dtype

    cdt = jnp.dtype(compute_dtype) if compute_dtype is not None else jnp.dtype(x.dtype)
    c_sz = cdt.itemsize
    out_sz = jnp.dtype(out_dtype).itemsize
    b_sz = jnp.dtype(b1.dtype).itemsize

    # Lane tiles: multiples of 128 (lane-dense stores), or the full dim if small.
    tn_eff = _pick_lane_tile(d_out, tn)
    tk_eff = _pick_lane_tile(d_ff, tk)

    # Row tile: derive the largest tm the per-generation VMEM budget allows, then
    # clamp to the request and to the (padded) problem size.
    row_mult = 16 if c_sz < 4 else 8
    usable = _usable_vmem_bytes()
    fixed = (2 * c_sz * d_model * tk_eff          # w1 block (double-buffered)
             + 2 * c_sz * tk_eff * tn_eff         # w2 block (double-buffered)
             + 2 * b_sz * (d_ff + d_out)          # resident biases
             + (2 << 20))                          # misc / compiler headroom
    per_row = (c_sz * d_ff                        # h cache (whole-kernel lifetime)
               + 2 * c_sz * d_model               # x tile (double-buffered)
               + 4 * tn_eff                       # f32 accumulator
               + 2 * out_sz * tn_eff)             # output tile (double-buffered)
    tm_budget = max(row_mult, int((usable - fixed) // per_row))
    tm_eff = min(tm, tm_budget, _round_up(M, row_mult))
    if min_row_tiles > 1:   # v7x megacore: give each TensorCore its own row tile(s)
        tm_eff = min(tm_eff, _round_up(pl.cdiv(M, min_row_tiles), row_mult))
    tm_eff = max(row_mult, (tm_eff // row_mult) * row_mult)
    Mp = _round_up(M, tm_eff)

    # Generation-aware VMEM limit: estimated footprint, capped at usable capacity.
    vmem_bytes = int(min(usable, fixed + tm_eff * per_row + (2 << 20)))
    vmem_bytes = max(vmem_bytes, 16 << 20)

    x2 = x.reshape(M, d_model).astype(cdt)
    if Mp != M:
        x2 = jnp.pad(x2, ((0, Mp - M), (0, 0)))
    w1c = w1.astype(cdt)
    w2c = w2.astype(cdt)
    b1_2 = b1.reshape(1, d_ff)
    b2_2 = b2.reshape(1, d_out)

    grid = (Mp // tm_eff, d_out // tn_eff, d_ff // tk_eff)

    out2 = pl.pallas_call(
        _ffn_kernel,
        out_shape=jax.ShapeDtypeStruct((Mp, d_out), out_dtype),
        grid_spec=pltpu.PrefetchScalarGridSpec(
            num_scalar_prefetch=0,
            grid=grid,
            in_specs=[
                pl.BlockSpec((tm_eff, d_model), lambda i, j, k: (i, 0)),   # x row tile
                # w1 d_ff-slice; only consumed on the j == 0 sweep, so pin the block
                # index for j > 0 to avoid streaming weights the kernel never reads.
                pl.BlockSpec((d_model, tk_eff),
                             lambda i, j, k: (0, jnp.where(j == 0, k, 0))),
                pl.BlockSpec((1, d_ff), lambda i, j, k: (0, 0)),           # b1 resident
                pl.BlockSpec((tk_eff, tn_eff), lambda i, j, k: (k, j)),    # w2 block
                pl.BlockSpec((1, d_out), lambda i, j, k: (0, 0)),          # b2 resident
            ],
            out_specs=pl.BlockSpec((tm_eff, tn_eff), lambda i, j, k: (i, j)),
            scratch_shapes=[
                pltpu.VMEM((tm_eff, d_ff), cdt),           # cached relu(x@w1+b1)
                pltpu.VMEM((tm_eff, tn_eff), jnp.float32), # accumulator
            ],
        ),
        compiler_params=pltpu.CompilerParams(
            # j must stay sequential (h-cache is filled at j == 0); megacore
            # sharding uses the row-tile axis i.
            dimension_semantics=("parallel", "arbitrary", "arbitrary"),
            vmem_limit_bytes=vmem_bytes,
        ),
    )(x2, w1c, b1_2, w2c, b2_2)

    if Mp != M:
        out2 = out2[:M]
    return out2.reshape(B, S, d_out)


def init_params(key, d_model, d_ff, dtype=jnp.float32):
    """PyTorch-Linear-style init (uniform +/- 1/sqrt(fan_in)); weights stored [in, out]."""
    k1, k2, k3, k4 = jax.random.split(key, 4)
    lim1 = 1.0 / (d_model ** 0.5)
    lim2 = 1.0 / (d_ff ** 0.5)
    w1 = jax.random.uniform(k1, (d_model, d_ff), dtype, -lim1, lim1)
    b1 = jax.random.uniform(k2, (d_ff,), dtype, -lim1, lim1)
    w2 = jax.random.uniform(k3, (d_ff, d_ff), dtype, -lim2, lim2)   # w_2: d_ff -> d_ff
    b2 = jax.random.uniform(k4, (d_ff,), dtype, -lim2, lim2)
    return w1, b1, w2, b2


if __name__ == "__main__":
    key = jax.random.PRNGKey(0)
    B, S, d_model, d_ff = 2, 16, 128, 256

    kx, kp = jax.random.split(key)
    x = jax.random.normal(kx, (B, S, d_model), jnp.float32)
    w1, b1, w2, b2 = init_params(kp, d_model, d_ff)

    # pure-JAX reference (dropout = identity in eval)
    ref = (jnp.maximum(x.reshape(-1, d_model) @ w1 + b1, 0.0) @ w2 + b2)
    ref = ref.reshape(B, S, d_ff)

    # Small explicit tiles: exercises the full (i, j, k) grid, the k-reduction
    # init/finalize, h-cache reuse across j, and the pinned-w1 index map.
    out_small = jax.block_until_ready(
        positionwise_ffn(x, w1, b1, w2, b2, tm=16, tn=128, tk=128))

    # Default (production) tiles, automatically clamped to the small demo shapes
    # by the VMEM-budgeted tm and the lane-tile picker.
    out_default = jax.block_until_ready(positionwise_ffn(x, w1, b1, w2, b2))

    # bf16 compute path (halves weight/activation HBM traffic; f32 accumulation).
    out_bf16 = jax.block_until_ready(
        positionwise_ffn(x, w1, b1, w2, b2, compute_dtype=jnp.bfloat16))

    assert out_small.shape == (B, S, d_ff)
    assert out_default.shape == (B, S, d_ff)
    assert out_bf16.shape == (B, S, d_ff)
    assert jnp.allclose(out_small, ref, atol=2e-3, rtol=2e-3)
    assert jnp.allclose(out_default, ref, atol=2e-3, rtol=2e-3)
    assert jnp.allclose(out_bf16, ref, atol=5e-2, rtol=5e-2)

    print("KERNEL_OK")
</pallas_src>

<mosaic_0001>
module attributes {stable_mosaic.version = 11 : i64} {
  func.func @_ffn_kernel(%arg0: i32, %arg1: i32, %arg2: i32, %arg3: memref<16x128xf32, #tpu.memory_space<vmem>>, %arg4: memref<128x128xf32, #tpu.memory_space<vmem>>, %arg5: memref<1x256xf32, #tpu.memory_space<vmem>>, %arg6: memref<128x128xf32, #tpu.memory_space<vmem>>, %arg7: memref<1x256xf32, #tpu.memory_space<vmem>>, %arg8: memref<16x128xf32, #tpu.memory_space<vmem>>, %arg9: memref<16x256xf32, #tpu.memory_space<vmem>>, %arg10: memref<16x128xf32, #tpu.memory_space<vmem>>) attributes {dimension_semantics = [#tpu.dimension_semantics<parallel>, #tpu.dimension_semantics<arbitrary>, #tpu.dimension_semantics<arbitrary>], iteration_bounds = array<i64: 2, 2, 2>, scalar_prefetch = 0 : i64, scratch_operands = 2 : i64, tpu.core_type = #tpu.core_type<tc>, window_params = [{transform_indices = @transform_0, window_bounds = array<i64: 16, 128>}, {transform_indices = @transform_1, window_bounds = array<i64: 128, 128>}, {pipeline_mode = #tpu.pipeline_mode<synchronous>, transform_indices = @transform_2, window_bounds = array<i64: 1, 256>}, {transform_indices = @transform_3, window_bounds = array<i64: 128, 128>}, {pipeline_mode = #tpu.pipeline_mode<synchronous>, transform_indices = @transform_4, window_bounds = array<i64: 1, 256>}, {transform_indices = @transform_5, window_bounds = array<i64: 16, 128>}]} {
    %c128_i32 = arith.constant 128 : i32
    %0 = arith.muli %arg2, %c128_i32 : i32
    %1 = tpu.assume_multiple %0, 128 : i32
    %c128_i32_0 = arith.constant 128 : i32
    %2 = arith.muli %arg1, %c128_i32_0 : i32
    %3 = tpu.assume_multiple %2, 128 : i32
    %c0_i32 = arith.constant 0 : i32
    %4 = arith.cmpi eq, %arg1, %c0_i32 : i32
    %5 = arith.extui %4 : i1 to i32
    %c0_i32_1 = arith.constant 0 : i32
    %6 = arith.cmpi ne, %5, %c0_i32_1 : i32
    scf.if %6 {
      %c0 = arith.constant 0 : index
      %c0_5 = arith.constant 0 : index
      %13 = vector.load %arg3[%c0, %c0_5] : memref<16x128xf32, #tpu.memory_space<vmem>>, vector<16x128xf32>
      %c0_6 = arith.constant 0 : index
      %c0_7 = arith.constant 0 : index
      %14 = vector.load %arg4[%c0_6, %c0_7] : memref<128x128xf32, #tpu.memory_space<vmem>>, vector<128x128xf32>
      %cst = arith.constant dense<0.000000e+00> : vector<16x128xf32>
      %15 = tpu.matmul %13, %14, %cst {dimension_numbers = #tpu.dot_dimension_numbers<[1], [0], [0], [1], [0, 0, 1, 1], [], []>} : vector<16x128xf32>, vector<128x128xf32>, vector<16x128xf32> -> vector<16x128xf32>
      %c0_8 = arith.constant 0 : index
      %16 = arith.index_cast %1 : i32 to index
      %17 = vector.load %arg5[%c0_8, %16] : memref<1x256xf32, #tpu.memory_space<vmem>>, vector<1x128xf32>
      %18 = vector.broadcast %17 : vector<1x128xf32> to vector<16x128xf32>
      %19 = arith.addf %15, %18 : vector<16x128xf32>
      %cst_9 = arith.constant 0.000000e+00 : f32
      %20 = vector.broadcast %cst_9 : f32 to vector<16x128xf32>
      %21 = arith.maximumf %19, %20 : vector<16x128xf32>
      %c0_10 = arith.constant 0 : index
      %22 = arith.index_cast %1 : i32 to index
      %23 = vector.load %arg9[%c0_10, %22] : memref<16x256xf32, #tpu.memory_space<vmem>>, vector<16x128xf32>
      tpu.vector_store %arg9[%c0_10, %22], %21 {strides = array<i32>} : memref<16x256xf32, #tpu.memory_space<vmem>>, vector<16x128xf32>,
      %c0_11 = arith.constant 0 : index
      %c0_12 = arith.constant 0 : index
      %24 = vector.load %arg6[%c0_11, %c0_12] : memref<128x128xf32, #tpu.memory_space<vmem>>, vector<128x128xf32>
      %cst_13 = arith.constant dense<0.000000e+00> : vector<16x128xf32>
      %25 = tpu.matmul %21, %24, %cst_13 {dimension_numbers = #tpu.dot_dimension_numbers<[1], [0], [0], [1], [0, 0, 1, 1], [], []>} : vector<16x128xf32>, vector<128x128xf32>, vector<16x128xf32> -> vector<16x128xf32>
      %c0_i32_14 = arith.constant 0 : i32
      %26 = arith.cmpi eq, %arg2, %c0_i32_14 : i32
      %27 = arith.extui %26 : i1 to i32
      %c0_i32_15 = arith.constant 0 : i32
      %28 = arith.cmpi ne, %27, %c0_i32_15 : i32
      scf.if %28 {
        %c0_18 = arith.constant 0 : index
        %c0_19 = arith.constant 0 : index
        %32 = vector.load %arg10[%c0_18, %c0_19] : memref<16x128xf32, #tpu.memory_space<vmem>>, vector<16x128xf32>
        tpu.vector_store %arg10[%c0_18, %c0_19], %25 {strides = array<i32>} : memref<16x128xf32, #tpu.memory_space<vmem>>, vector<16x128xf32>,
      } else {
      }
      %c0_i32_16 = arith.constant 0 : i32
      %29 = arith.cmpi sgt, %arg2, %c0_i32_16 : i32
      %30 = arith.extui %29 : i1 to i32
      %c0_i32_17 = arith.constant 0 : i32
      %31 = arith.cmpi ne, %30, %c0_i32_17 : i32
      scf.if %31 {
        %c0_18 = arith.constant 0 : index
        %c0_19 = arith.constant 0 : index
        %32 = vector.load %arg10[%c0_18, %c0_19] : memref<16x128xf32, #tpu.memory_space<vmem>>, vector<16x128xf32>
        %33 = arith.addf %32, %25 : vector<16x128xf32>
        %c0_20 = arith.constant 0 : index
        %c0_21 = arith.constant 0 : index
        %34 = vector.load %arg10[%c0_20, %c0_21] : memref<16x128xf32, #tpu.memory_space<vmem>>, vector<16x128xf32>
        tpu.vector_store %arg10[%c0_20, %c0_21], %33 {strides = array<i32>} : memref<16x128xf32, #tpu.memory_space<vmem>>, vector<16x128xf32>,
      } else {
      }
    } else {
    }
    %c0_i32_2 = arith.constant 0 : i32
    %7 = arith.cmpi sgt, %arg1, %c0_i32_2 : i32
    %8 = arith.extui %7 : i1 to i32
    %c0_i32_3 = arith.constant 0 : i32
    %9 = arith.cmpi ne, %8, %c0_i32_3 : i32
    scf.if %9 {
      %c0 = arith.constant 0 : index
      %13 = arith.index_cast %1 : i32 to index
      %14 = vector.load %arg9[%c0, %13] : memref<16x256xf32, #tpu.memory_space<vmem>>, vector<16x128xf32>
      %c0_5 = arith.constant 0 : index
      %c0_6 = arith.constant 0 : index
      %15 = vector.load %arg6[%c0_5, %c0_6] : memref<128x128xf32, #tpu.memory_space<vmem>>, vector<128x128xf32>
      %cst = arith.constant dense<0.000000e+00> : vector<16x128xf32>
      %16 = tpu.matmul %14, %15, %cst {dimension_numbers = #tpu.dot_dimension_numbers<[1], [0], [0], [1], [0, 0, 1, 1], [], []>} : vector<16x128xf32>, vector<128x128xf32>, vector<16x128xf32> -> vector<16x128xf32>
      %c0_i32_7 = arith.constant 0 : i32
      %17 = arith.cmpi eq, %arg2, %c0_i32_7 : i32
      %18 = arith.extui %17 : i1 to i32
      %c0_i32_8 = arith.constant 0 : i32
      %19 = arith.cmpi ne, %18, %c0_i32_8 : i32
      scf.if %19 {
        %c0_11 = arith.constant 0 : index
        %c0_12 = arith.constant 0 : index
        %23 = vector.load %arg10[%c0_11, %c0_12] : memref<16x128xf32, #tpu.memory_space<vmem>>, vector<16x128xf32>
        tpu.vector_store %arg10[%c0_11, %c0_12], %16 {strides = array<i32>} : memref<16x128xf32, #tpu.memory_space<vmem>>, vector<16x128xf32>,
      } else {
      }
      %c0_i32_9 = arith.constant 0 : i32
      %20 = arith.cmpi sgt, %arg2, %c0_i32_9 : i32
      %21 = arith.extui %20 : i1 to i32
      %c0_i32_10 = arith.constant 0 : i32
      %22 = arith.cmpi ne, %21, %c0_i32_10 : i32
      scf.if %22 {
        %c0_11 = arith.constant 0 : index
        %c0_12 = arith.constant 0 : index
        %23 = vector.load %arg10[%c0_11, %c0_12] : memref<16x128xf32, #tpu.memory_space<vmem>>, vector<16x128xf32>
        %24 = arith.addf %23, %16 : vector<16x128xf32>
        %c0_13 = arith.constant 0 : index
        %c0_14 = arith.constant 0 : index
        %25 = vector.load %arg10[%c0_13, %c0_14] : memref<16x128xf32, #tpu.memory_space<vmem>>, vector<16x128xf32>
        tpu.vector_store %arg10[%c0_13, %c0_14], %24 {strides = array<i32>} : memref<16x128xf32, #tpu.memory_space<vmem>>, vector<16x128xf32>,
      } else {
      }
    } else {
    }
    %c1_i32 = arith.constant 1 : i32
    %10 = arith.cmpi eq, %arg2, %c1_i32 : i32
    %11 = arith.extui %10 : i1 to i32
    %c0_i32_4 = arith.constant 0 : i32
    %12 = arith.cmpi ne, %11, %c0_i32_4 : i32
    scf.if %12 {
      %c0 = arith.constant 0 : index
      %c0_5 = arith.constant 0 : index
      %13 = vector.load %arg10[%c0, %c0_5] : memref<16x128xf32, #tpu.memory_space<vmem>>, vector<16x128xf32>
      %c0_6 = arith.constant 0 : index
      %14 = arith.index_cast %3 : i32 to index
      %15 = vector.load %arg7[%c0_6, %14] : memref<1x256xf32, #tpu.memory_space<vmem>>, vector<1x128xf32>
      %16 = vector.broadcast %15 : vector<1x128xf32> to vector<16x128xf32>
      %17 = arith.addf %13, %16 : vector<16x128xf32>
      %c0_7 = arith.constant 0 : index
      %c0_8 = arith.constant 0 : index
      %18 = vector.load %arg8[%c0_7, %c0_8] : memref<16x128xf32, #tpu.memory_space<vmem>>, vector<16x128xf32>
      tpu.vector_store %arg8[%c0_7, %c0_8], %17 {strides = array<i32>} : memref<16x128xf32, #tpu.memory_space<vmem>>, vector<16x128xf32>,
    } else {
    }
    return
  }
  func.func @transform_0(%arg0: i32, %arg1: i32, %arg2: i32) -> (i32, i32) {
    %c0_i32 = arith.constant 0 : i32
    %c0_i32_0 = arith.constant 0 : i32
    return %arg0, %c0_i32 : i32, i32
  }
  func.func @transform_1(%arg0: i32, %arg1: i32, %arg2: i32) -> (i32, i32) {
    %c0_i32 = arith.constant 0 : i32
    %0 = arith.cmpi eq, %arg1, %c0_i32 : i32
    %c0_i32_0 = arith.constant 0 : i32
    %1 = arith.select %0, %arg2, %c0_i32_0 : i32
    %c0_i32_1 = arith.constant 0 : i32
    %c0_i32_2 = arith.constant 0 : i32
    return %c0_i32_1, %1 : i32, i32
  }
  func.func @transform_2(%arg0: i32, %arg1: i32, %arg2: i32) -> (i32, i32) {
    %c0_i32 = arith.constant 0 : i32
    %c0_i32_0 = arith.constant 0 : i32
    %c0_i32_1 = arith.constant 0 : i32
    return %c0_i32, %c0_i32_0 : i32, i32
  }
  func.func @transform_3(%arg0: i32, %arg1: i32, %arg2: i32) -> (i32, i32) {
    %c0_i32 = arith.constant 0 : i32
    return %arg2, %arg1 : i32, i32
  }
  func.func @transform_4(%arg0: i32, %arg1: i32, %arg2: i32) -> (i32, i32) {
    %c0_i32 = arith.constant 0 : i32
    %c0_i32_0 = arith.constant 0 : i32
    %c0_i32_1 = arith.constant 0 : i32
    return %c0_i32, %c0_i32_0 : i32, i32
  }
  func.func @transform_5(%arg0: i32, %arg1: i32, %arg2: i32) -> (i32, i32) {
    %c0_i32 = arith.constant 0 : i32
    return %arg0, %arg1 : i32, i32
  }
}

</mosaic_0001>

<llo_original>
// kernel: positionwise_ffn.1
$region0: #{positionwise_ffn.1}
  #allocation0 [shape = 'u32[]', space=smem, size = 0x4, offset = 0x4, fixed_abs, tag = 'smem constant byte address 0x4 - core index']
  #allocation1 [shape = 'u32[72,128]{1,0:T(1,128)}', space=vmem, size = 0x9000, scoped, tag = 'internal scratch']
  #allocation2 [shape = 'f32[16,256]{1,0:T(8,128)}', space=vmem, size = 0x4000, scoped, tag = 'scratch operand']
  #allocation3 [shape = 'f32[16,128]{1,0:T(8,128)}', space=vmem, size = 0x2000, scoped, tag = 'scratch operand']
  %s0 = inlined_call_operand.hbm [shape: f32[32,128], index: 0, kind: input, shape index: {}]
  %s1 = inlined_call_operand.hbm [shape: f32[128,256], index: 1, kind: input, shape index: {}]
  %s2 = inlined_call_operand.vmem [shape: f32[1,256], index: 2, kind: input, shape index: {}]
  %s3 = inlined_call_operand.hbm [shape: f32[256,256], index: 3, kind: input, shape index: {}]
  %s4 = inlined_call_operand.vmem [shape: f32[1,256], index: 4, kind: input, shape index: {}]
  %s5 = inlined_call_operand.hbm [shape: f32[32,256], index: 5, kind: output, shape index: {}]
  %s6 = sld [smem:[#allocation0]]
  $region93: #{positionwise_ffn.1} parent=0
    _
  %s8 = ssub.s32 1, %s6
  %s9 = scalar_select 0, %s8, %s6
  $region1: #{positionwise_ffn.1} parent=0
    #allocation4 [shape = 'u8[16384]{0}', space=vmem, size = 0x4000, scoped, tag = 'input window, operand 0']
    #allocation5 [shape = 's32[2]{0}', space=sflag, size = 0x8, scoped, tag = 'scoped memory for positionwise_ffn.1']
    #allocation6 [shape = 's32[2]{0}', space=sflag, size = 0x8, scoped, tag = 'scoped memory for positionwise_ffn.1']
    #allocation7 [shape = 'u8[131072]{0}', space=vmem, size = 0x20000, scoped, tag = 'input window, operand 1']
    #allocation8 [shape = 's32[2]{0}', space=sflag, size = 0x8, scoped, tag = 'scoped memory for positionwise_ffn.1']
    #allocation9 [shape = 'u8[131072]{0}', space=vmem, size = 0x20000, scoped, tag = 'input window, operand 3']
    #allocation10 [shape = 'u8[16384]{0}', space=vmem, size = 0x4000, scoped, tag = 'output window, operand 0']
    %10 = vsyncpa [#allocation5], 0
    %s11 = scalar_lea.sflag [#allocation5], 1
    %12 = vsyncpa %s11, 0
    %13 = vsyncpa [#allocation8], 0
    %s14 = scalar_lea.sflag [#allocation8], 1
    %15 = vsyncpa %s14, 0
    %16 = vsyncpa [#allocation6], 0
    %s17 = scalar_lea.sflag [#allocation6], 1
    %18 = vsyncpa %s17, 0
    loop: start=0, step=1, limit=10
    $region2: #{positionwise_ffn.1} parent=1 // loop_pre_header
      _
    $region3: #{positionwise_ffn.1} parent=1 // loop_header
      %s20 = sphi 0, %s24
      %p21 = scmp.ge.s32.totalorder %s20, 10
      %s27 = sphi 0, %s46
      %s28 = sphi 0, %s42
      %s29 = sphi 0, %s38
      %s30 = sphi 0, %s27
      %s31 = sphi 0, %s28
      %s32 = sphi 0, %s29
      %s33 = sphi 0, %s30
      %s34 = sphi 0, %s31
      %s35 = sphi 0, %s32
      %s49 = sphi 0, %s51
      %s52 = sphi 0, %s49
      %s53 = sphi 0, %s52
      %s69 = sphi 0, %s53
      %s79 = sphi 0, %s81
      %s82 = sphi 0, %s79
      %s83 = sphi 0, %s82
      %s99 = sphi 0, %s83
      %s103 = sphi 0, %s103
      %s105 = sphi 0, %s103
      %s106 = sphi 0, %s105
      %s120 = sphi 0, %s106
      %s128 = sphi 0, %s130
      %s131 = sphi 0, %s128
      %s132 = sphi 0, %s131
      %s148 = sphi 0, %s132
      %s152 = sphi 0, %s152
      %s154 = sphi 0, %s152
      %s155 = sphi 0, %s154
      %s169 = sphi 0, %s155
      %s177 = sphi 0, %s179
      %s180 = sphi 0, %s177
      %s181 = sphi 0, %s180
      %s197 = sphi 0, %s181
    $region4: #{positionwise_ffn.1} parent=1 // loop_header_branch
      %23 = sbr.rel (%p21) target = $region8
    $region5: #{positionwise_ffn.1} parent=1 // loop_body
      %s25 = ssub.s32 %s20, 1
      %s26 = ssub.s32 %s20, 2
      %s36 = sadd.s32 1, %s29
      %p37 = scmp.ge.s32.totalorder %s36, 2
      %s38 = scalar_select %p37, 0, %s36
      %s39 = sadd.s32 1, %s28
      %s40 = scalar_select %p37, %s39, %s28
      %p41 = scmp.ge.s32.totalorder %s40, 2
      %s42 = scalar_select %p41, 0, %s40
      %s43 = sadd.s32 1, %s27
      %s44 = scalar_select %p41, %s43, %s27
      %p45 = scmp.ge.s32.totalorder %s44, 2
      %s46 = scalar_select %p45, 0, %s44
      %s47 = ssub.s32 %s27, %s46
      %p48 = scmp.eq.s32.totalorder %s47, 0
      %s50 = sadd.s32 %s49, 1
      %s51 = scalar_select %p48, %s49, %s50
      %p54 = pneg %p48
      %p55 = scmp.eq.s32.totalorder %s20, 7
      %p56 = por %p54, %p55
      %p57 = scmp.ne.s32.totalorder %s49, %s52
      %p58 = scmp.eq.s32.totalorder %s20, 0
      %p59 = por %p57, %p58
      %p60 = scmp.ne.s32.totalorder %s49, %s52
      %p61 = scmp.eq.s32.totalorder %s25, 7
      %p62 = por %p60, %p61
      %p63 = scmp.ne.s32.totalorder %s52, %s53
      %p64 = scmp.eq.s32.totalorder %s25, 0
      %p65 = por %p63, %p64
      %p66 = scmp.ne.s32.totalorder %s52, %s53
      %p67 = scmp.eq.s32.totalorder %s26, 7
      %p68 = por %p66, %p67
      %p70 = scmp.ne.s32.totalorder %s53, %s69
      %p71 = scmp.eq.s32.totalorder %s26, 0
      %p72 = por %p70, %p71
      %p73 = scmp.eq.s32.totalorder %s28, 0
      %s74 = scalar_select %p73, %s29, 0
      %p75 = scmp.eq.s32.totalorder %s42, 0
      %s76 = scalar_select %p75, %s38, 0
      %s77 = ssub.s32 %s74, %s76
      %p78 = scmp.eq.s32.totalorder %s77, 0
      %s80 = sadd.s32 %s79, 1
      %s81 = scalar_select %p78, %s79, %s80
      %p84 = pneg %p78
      %p85 = scmp.eq.s32.totalorder %s20, 7
      %p86 = por %p84, %p85
      %p87 = scmp.ne.s32.totalorder %s79, %s82
      %p88 = scmp.eq.s32.totalorder %s20, 0
      %p89 = por %p87, %p88
      %p90 = scmp.ne.s32.totalorder %s79, %s82
      %p91 = scmp.eq.s32.totalorder %s25, 7
      %p92 = por %p90, %p91
      %p93 = scmp.ne.s32.totalorder %s82, %s83
      %p94 = scmp.eq.s32.totalorder %s25, 0
      %p95 = por %p93, %p94
      %p96 = scmp.ne.s32.totalorder %s82, %s83
      %p97 = scmp.eq.s32.totalorder %s26, 7
      %p98 = por %p96, %p97
      %p100 = scmp.ne.s32.totalorder %s83, %s99
      %p101 = scmp.eq.s32.totalorder %s26, 0
      %p102 = por %p100, %p101
      %s104 = sadd.s32 %s103, 1
      %p107 = scmp.eq.s32.totalorder %s20, 7
      %p108 = scmp.ne.s32.totalorder %s103, %s105
      %p109 = scmp.eq.s32.totalorder %s20, 0
      %p110 = por %p108, %p109
      %p111 = scmp.ne.s32.totalorder %s103, %s105
      %p112 = scmp.eq.s32.totalorder %s25, 7
      %p113 = por %p111, %p112
      %p114 = scmp.ne.s32.totalorder %s105, %s106
      %p115 = scmp.eq.s32.totalorder %s25, 0
      %p116 = por %p114, %p115
      %p117 = scmp.ne.s32.totalorder %s105, %s106
      %p118 = scmp.eq.s32.totalorder %s26, 7
      %p119 = por %p117, %p118
      %p121 = scmp.ne.s32.totalorder %s106, %s120
      %p122 = scmp.eq.s32.totalorder %s26, 0
      %p123 = por %p121, %p122
      %s124 = ssub.s32 %s29, %s38
      %s125 = ssub.s32 %s28, %s42
      %s126 = sor.u32 %s124, %s125
      %p127 = scmp.eq.s32.totalorder %s126, 0
      %s129 = sadd.s32 %s128, 1
      %s130 = scalar_select %p127, %s128, %s129
      %p133 = pneg %p127
      %p134 = scmp.eq.s32.totalorder %s20, 7
      %p135 = por %p133, %p134
      %p136 = scmp.ne.s32.totalorder %s128, %s131
      %p137 = scmp.eq.s32.totalorder %s20, 0
      %p138 = por %p136, %p137
      %p139 = scmp.ne.s32.totalorder %s128, %s131
      %p140 = scmp.eq.s32.totalorder %s25, 7
      %p141 = por %p139, %p140
      %p142 = scmp.ne.s32.totalorder %s131, %s132
      %p143 = scmp.eq.s32.totalorder %s25, 0
      %p144 = por %p142, %p143
      %p145 = scmp.ne.s32.totalorder %s131, %s132
      %p146 = scmp.eq.s32.totalorder %s26, 7
      %p147 = por %p145, %p146
      %p149 = scmp.ne.s32.totalorder %s132, %s148
      %p150 = scmp.eq.s32.totalorder %s26, 0
      %p151 = por %p149, %p150
      %s153 = sadd.s32 %s152, 1
      %p156 = scmp.eq.s32.totalorder %s20, 7
      %p157 = scmp.ne.s32.totalorder %s152, %s154
      %p158 = scmp.eq.s32.totalorder %s20, 0
      %p159 = por %p157, %p158
      %p160 = scmp.ne.s32.totalorder %s152, %s154
      %p161 = scmp.eq.s32.totalorder %s25, 7
      %p162 = por %p160, %p161
      %p163 = scmp.ne.s32.totalorder %s154, %s155
      %p164 = scmp.eq.s32.totalorder %s25, 0
      %p165 = por %p163, %p164
      %p166 = scmp.ne.s32.totalorder %s154, %s155
      %p167 = scmp.eq.s32.totalorder %s26, 7
      %p168 = por %p166, %p167
      %p170 = scmp.ne.s32.totalorder %s155, %s169
      %p171 = scmp.eq.s32.totalorder %s26, 0
      %p172 = por %p170, %p171
      %s173 = ssub.s32 %s27, %s46
      %s174 = ssub.s32 %s28, %s42
      %s175 = sor.u32 %s173, %s174
      %p176 = scmp.eq.s32.totalorder %s175, 0
      %s178 = sadd.s32 %s177, 1
      %s179 = scalar_select %p176, %s177, %s178
      %p182 = pneg %p176
      %p183 = scmp.eq.s32.totalorder %s20, 7
      %p184 = por %p182, %p183
      %p185 = scmp.ne.s32.totalorder %s177, %s180
      %p186 = scmp.eq.s32.totalorder %s20, 0
      %p187 = por %p185, %p186
      %p188 = scmp.ne.s32.totalorder %s177, %s180
      %p189 = scmp.eq.s32.totalorder %s25, 7
      %p190 = por %p188, %p189
      %p191 = scmp.ne.s32.totalorder %s180, %s181
      %p192 = scmp.eq.s32.totalorder %s25, 0
      %p193 = por %p191, %p192
      %p194 = scmp.ne.s32.totalorder %s180, %s181
      %p195 = scmp.eq.s32.totalorder %s26, 7
      %p196 = por %p194, %p195
      %p198 = scmp.ne.s32.totalorder %s181, %s197
      %p199 = scmp.eq.s32.totalorder %s26, 0
      %p200 = por %p198, %p199
      %p201 = scmp.le.s32.totalorder 1, %s20
      %p202 = scmp.lt.s32.totalorder %s20, 9
      %p203 = pnand %p201, %p202
      %p204 = pneg %p203
      // Predicated region
      $region9: #{positionwise_ffn.1} parent=5 // pred_check
        _
      $region10: #{positionwise_ffn.1} parent=5 // pred_check_branch
        %206 = sbr.rel (%p203) target = $region12
      $region11: #{positionwise_ffn.1} parent=5 // pred_region
        %s207 = ssub.s32 %s20, 1
        // Predicated region
        $region13: #{positionwise_ffn.1} parent=11 // pred_check
          %p208 = pneg %p116
        $region14: #{positionwise_ffn.1} parent=11 // pred_check_branch
          %210 = sbr.rel (%p208) target = $region16
        $region15: #{positionwise_ffn.1} parent=11 // pred_region
          _
        $region16: #{positionwise_ffn.1} parent=11 // pred_fallthru
          _
        // Predicated region
        $region17: #{positionwise_ffn.1} parent=11 // pred_check
          %p211 = pneg %p165
        $region18: #{positionwise_ffn.1} parent=11 // pred_check_branch
          %213 = sbr.rel (%p211) target = $region20
        $region19: #{positionwise_ffn.1} parent=11 // pred_region
          _
        $region20: #{positionwise_ffn.1} parent=11 // pred_fallthru
          _
      $region12: #{positionwise_ffn.1} parent=5 // pred_fallthru
        _
      %p214 = scmp.lt.s32.totalorder %s20, 8
      // Predicated region
      $region21: #{positionwise_ffn.1} parent=5 // pred_check
        %p215 = pneg %p214
      $region22: #{positionwise_ffn.1} parent=5 // pred_check_branch
        %217 = sbr.rel (%p215) target = $region24
      $region23: #{positionwise_ffn.1} parent=5 // pred_region
        // Predicated region
        $region25: #{positionwise_ffn.1} parent=23 // pred_check
          %p218 = pneg %p59
        $region26: #{positionwise_ffn.1} parent=23 // pred_check_branch
          %220 = sbr.rel (%p218) target = $region28
        $region27: #{positionwise_ffn.1} parent=23 // pred_region
          %s221 = sand.u32 %s49, 1
          %s222 = scalar_lea.sflag [#allocation5], %s221
          %s223 = sand.u32 %s49, 1
          %s224 = smul.addr %s223, 16
          %s225 = scalar_lea.vmem [#allocation4], %s224
          %s226 = smul.u32 2, %s27
          %228 = vsyncadd %s222, 0
          %s229 = smul.addr %s226, 8
          %s230 = scalar_lea.hbm %s0, %s229
          %s231 = sshll.u32 %s230, 4
          %s232 = int_to_ptr.hbm [resolvable:$true] %s231
          %s233 = sshll.u32 %s225, 4
          %s234 = int_to_ptr.vmem [resolvable:$true] %s233
          %239 = dma.hbm_to_vmem [thread:$0]  %s232, 256, %s234, %s222, 128, 128, 8
        $region28: #{positionwise_ffn.1} parent=23 // pred_fallthru
          _
        // Predicated region
        $region29: #{positionwise_ffn.1} parent=23 // pred_check
          %p240 = pneg %p89
        $region30: #{positionwise_ffn.1} parent=23 // pred_check_branch
          %242 = sbr.rel (%p240) target = $region32
        $region31: #{positionwise_ffn.1} parent=23 // pred_region
          %s243 = sand.u32 %s20, 1
          %s244 = scalar_lea.sflag [#allocation8], %s243
          %s245 = sand.u32 %s79, 1
          %s246 = smul.addr %s245, 128
          %s247 = scalar_lea.vmem [#allocation7], %s246
          %p248 = scmp.eq.s32.totalorder %s28, 0
          %s249 = scalar_select %p248, %s29, 0
          %251 = vsyncadd %s244, 0
          %s252 = smul.addr %s249, 8
          %s253 = scalar_lea.hbm %s1, %s252
          %s254 = sshll.u32 %s253, 4
          %s255 = int_to_ptr.hbm [resolvable:$true] %s254
          %s256 = sshll.u32 %s247, 4
          %s257 = int_to_ptr.vmem [resolvable:$true] %s256
          %262 = dma.hbm_to_vmem [thread:$0]  %s255, 2048, %s257, %s244, 256, 128, 8
        $region32: #{positionwise_ffn.1} parent=23 // pred_fallthru
          _
        // Predicated region
        $region33: #{positionwise_ffn.1} parent=23 // pred_check
          %p263 = pneg %p138
        $region34: #{positionwise_ffn.1} parent=23 // pred_check_branch
          %265 = sbr.rel (%p263) target = $region36
        $region35: #{positionwise_ffn.1} parent=23 // pred_region
          %s266 = sand.u32 %s20, 1
          %s267 = scalar_lea.sflag [#allocation8], %s266
          %s268 = sand.u32 %s128, 1
          %s269 = smul.addr %s268, 128
          %s270 = scalar_lea.vmem [#allocation9], %s269
          %s271 = smul.u32 16, %s29
          %273 = vsyncadd %s267, 0
          %s274 = smul.addr %s271, 2
          %s275 = sadd.s32 %s28, %s274
          %s276 = smul.addr %s275, 8
          %s277 = scalar_lea.hbm %s3, %s276
          %s278 = sshll.u32 %s277, 4
          %s279 = int_to_ptr.hbm [resolvable:$true] %s278
          %s280 = sshll.u32 %s270, 4
          %s281 = int_to_ptr.vmem [resolvable:$true] %s280
          %286 = dma.hbm_to_vmem [thread:$0]  %s279, 2048, %s281, %s267, 256, 128, 8
        $region36: #{positionwise_ffn.1} parent=23 // pred_fallthru
          _
      $region24: #{positionwise_ffn.1} parent=5 // pred_fallthru
        _
      %p287 = scmp.le.s32.totalorder 1, %s20
      %p288 = scmp.lt.s32.totalorder %s20, 9
      %p289 = pnand %p287, %p288
      %p290 = pneg %p289
      // Predicated region
      $region37: #{positionwise_ffn.1} parent=5 // pred_check
        _
      $region38: #{positionwise_ffn.1} parent=5 // pred_check_branch
        %292 = sbr.rel (%p289) target = $region40
      $region39: #{positionwise_ffn.1} parent=5 // pred_region
        %s293 = ssub.s32 %s20, 1
        %s294 = sand.u32 %s52, 1
        %s295 = scalar_lea.sflag [#allocation5], %s294
        %s296 = sand.u32 %s52, 1
        %s297 = smul.addr %s296, 16
        %s298 = scalar_lea.vmem [#allocation4], %s297
        // Predicated region
        $region41: #{positionwise_ffn.1} parent=39 // pred_check
          %p299 = pneg %p65
        $region42: #{positionwise_ffn.1} parent=39 // pred_check_branch
          %301 = sbr.rel (%p299) target = $region44
        $region43: #{positionwise_ffn.1} parent=39 // pred_region
          %303 = dma.done %s295, 256
        $region44: #{positionwise_ffn.1} parent=39 // pred_fallthru
          _
        %s304 = sand.u32 %s25, 1
        %s305 = scalar_lea.sflag [#allocation8], %s304
        %s306 = sand.u32 %s82, 1
        %s307 = smul.addr %s306, 128
        %s308 = scalar_lea.vmem [#allocation7], %s307
        // Predicated region
        $region45: #{positionwise_ffn.1} parent=39 // pred_check
          %p309 = pneg %p95
        $region46: #{positionwise_ffn.1} parent=39 // pred_check_branch
          %311 = sbr.rel (%p309) target = $region48
        $region47: #{positionwise_ffn.1} parent=39 // pred_region
          %313 = dma.done %s305, 2048
        $region48: #{positionwise_ffn.1} parent=39 // pred_fallthru
          _
        %s314 = sand.u32 %s25, 1
        %s315 = scalar_lea.sflag [#allocation8], %s314
        %s316 = sand.u32 %s131, 1
        %s317 = smul.addr %s316, 128
        %s318 = scalar_lea.vmem [#allocation9], %s317
        // Predicated region
        $region49: #{positionwise_ffn.1} parent=39 // pred_check
          %p319 = pneg %p144
        $region50: #{positionwise_ffn.1} parent=39 // pred_check_branch
          %321 = sbr.rel (%p319) target = $region52
        $region51: #{positionwise_ffn.1} parent=39 // pred_region
          %323 = dma.done %s315, 2048
        $region52: #{positionwise_ffn.1} parent=39 // pred_fallthru
          _
        %s324 = sand.u32 %s52, 1
        %s325 = scalar_lea.sflag [#allocation5], %s324
        %s326 = sand.u32 %s52, 1
        %s327 = smul.addr %s326, 16
        %s328 = scalar_lea.vmem [#allocation4], %s327
        %p329 = pneg %p65
        %p330 = pneg %p62
        %s331 = sand.u32 %s25, 1
        %s332 = scalar_lea.sflag [#allocation8], %s331
        %s333 = sand.u32 %s82, 1
        %s334 = smul.addr %s333, 128
        %s335 = scalar_lea.vmem [#allocation7], %s334
        %p336 = pneg %p95
        %p337 = pneg %p92
        %p338 = pneg %p116
        %p339 = pneg %p113
        %s340 = sand.u32 %s25, 1
        %s341 = scalar_lea.sflag [#allocation8], %s340
        %s342 = sand.u32 %s131, 1
        %s343 = smul.addr %s342, 128
        %s344 = scalar_lea.vmem [#allocation9], %s343
        %p345 = pneg %p144
        %p346 = pneg %p141
        %p347 = pneg %p165
        %p348 = pneg %p162
        %p349 = pneg %p193
        %p350 = pneg %p190
        %s351 = sand.u32 %s180, 1
        %s352 = scalar_lea.sflag [#allocation6], %s351
        %s353 = sand.u32 %s180, 1
        %s354 = smul.addr %s353, 16
        %s355 = scalar_lea.vmem [#allocation10], %s354
        %s356 = smul.u32 2, %s30
        %p357 = scmp.eq.s32.totalorder %s31, 0
        %s358 = scalar_select %p357, %s32, 0
        %s359 = smul.u32 16, %s32
        %s360 = smul.u32 2, %s30
        %s361 = smul.u32 %s32, 128
        %s362 = smul.u32 %s31, 128
        %p363 = scmp.eq.s32.totalorder %s31, 0
        // Predicated region
        $region53: #{positionwise_ffn.1} parent=39 // pred_check
          %p364 = pneg %p363
        $region54: #{positionwise_ffn.1} parent=39 // pred_check_branch
          %366 = sbr.rel (%p364) target = $region56
        $region55: #{positionwise_ffn.1} parent=39 // pred_region
          %v367 = vld [vmem:[%s298] sm:$0xff]
          %v368 = vld [vmem:[%s298 + $0x8] sm:$0xff]
          %v369 = vld [vmem:[%s308] sm:$0xff]
          %v370 = vld [vmem:[%s308 + $0x8] sm:$0xff]
          %v371 = vld [vmem:[%s308 + $0x10] sm:$0xff]
          %v372 = vld [vmem:[%s308 + $0x18] sm:$0xff]
          %v373 = vld [vmem:[%s308 + $0x20] sm:$0xff]
          %v374 = vld [vmem:[%s308 + $0x28] sm:$0xff]
          %v375 = vld [vmem:[%s308 + $0x30] sm:$0xff]
          %v376 = vld [vmem:[%s308 + $0x38] sm:$0xff]
          %v377 = vld [vmem:[%s308 + $0x40] sm:$0xff]
          %v378 = vld [vmem:[%s308 + $0x48] sm:$0xff]
          %v379 = vld [vmem:[%s308 + $0x50] sm:$0xff]
          %v380 = vld [vmem:[%s308 + $0x58] sm:$0xff]
          %v381 = vld [vmem:[%s308 + $0x60] sm:$0xff]
          %v382 = vld [vmem:[%s308 + $0x68] sm:$0xff]
          %v383 = vld [vmem:[%s308 + $0x70] sm:$0xff]
          %v384 = vld [vmem:[%s308 + $0x78] sm:$0xff]
          %s385 = sshra.s32 %s361, 7
          %s386 = sand.u32 %s361, 127
          %s387 = scalar_lea.vmem %s2, %s385
          %v388 = vld [vmem:[%s387] sm:$0x1]
          %v390 = vperm.slane %v388, 0
          %392 = vmatpush.msra.mxu0 %v384
          %393 = vmatpush.msra.mxu0 %v383
          %394 = vmatpush.msra.mxu0 %v382
          %395 = vmatpush.msra.mxu0 %v381
          %396 = vmatpush.msra.mxu0 %v380
          %397 = vmatpush.msra.mxu0 %v379
          %398 = vmatpush.msra.mxu0 %v378
          %399 = vmatpush.msra.mxu0 %v377
          %400 = vmatpush.msra.mxu0 %v376
          %401 = vmatpush.msra.mxu0 %v375
          %402 = vmatpush.msra.mxu0 %v374
          %403 = vmatpush.msra.mxu0 %v373
          %404 = vmatpush.msra.mxu0 %v372
          %405 = vmatpush.msra.mxu0 %v371
          %406 = vmatpush.msra.mxu0 %v370
          %407 = vmatpush.msra.mxu0 %v369
          %408 = vmatmul.f32.gmra.mxu0 %v367
          %v409 = vpop.f32.mrf.mxu0
          %v410 = vadd.f32 %v390, %v409
          %411 = vmatmul.f32.gmra.mxu0 %v368
          %v412 = vpop.f32.mrf.mxu0
          %v413 = vadd.f32 %v390, %v412
          %414 = vdwg.mxu0
          %v415 = vmax.f32 %v410, 0.0
          %v416 = vmax.f32 %v413, 0.0
          %s417 = smul.addr %s385, 8
          %s418 = scalar_lea.vmem [#allocation2], %s417
          %419 = vst [vmem:[%s418] sm:$0xff] %v415
          %420 = vst [vmem:[%s418 + $0x10] sm:$0xff] %v416
          %v421 = vld [vmem:[%s318] sm:$0xff]
          %v422 = vld [vmem:[%s318 + $0x8] sm:$0xff]
          %v423 = vld [vmem:[%s318 + $0x10] sm:$0xff]
          %v424 = vld [vmem:[%s318 + $0x18] sm:$0xff]
          %v425 = vld [vmem:[%s318 + $0x20] sm:$0xff]
          %v426 = vld [vmem:[%s318 + $0x28] sm:$0xff]
          %v427 = vld [vmem:[%s318 + $0x30] sm:$0xff]
          %v428 = vld [vmem:[%s318 + $0x38] sm:$0xff]
          %v429 = vld [vmem:[%s318 + $0x40] sm:$0xff]
          %v430 = vld [vmem:[%s318 + $0x48] sm:$0xff]
          %v431 = vld [vmem:[%s318 + $0x50] sm:$0xff]
          %v432 = vld [vmem:[%s318 + $0x58] sm:$0xff]
          %v433 = vld [vmem:[%s318 + $0x60] sm:$0xff]
          %v434 = vld [vmem:[%s318 + $0x68] sm:$0xff]
          %v435 = vld [vmem:[%s318 + $0x70] sm:$0xff]
          %v436 = vld [vmem:[%s318 + $0x78] sm:$0xff]
          %437 = vmatpush.msra.mxu0 %v436
          %438 = vmatpush.msra.mxu0 %v435
          %439 = vmatpush.msra.mxu0 %v434
          %440 = vmatpush.msra.mxu0 %v433
          %441 = vmatpush.msra.mxu0 %v432
          %442 = vmatpush.msra.mxu0 %v431
          %443 = vmatpush.msra.mxu0 %v430
          %444 = vmatpush.msra.mxu0 %v429
          %445 = vmatpush.msra.mxu0 %v428
          %446 = vmatpush.msra.mxu0 %v427
          %447 = vmatpush.msra.mxu0 %v426
          %448 = vmatpush.msra.mxu0 %v425
          %449 = vmatpush.msra.mxu0 %v424
          %450 = vmatpush.msra.mxu0 %v423
          %451 = vmatpush.msra.mxu0 %v422
          %452 = vmatpush.msra.mxu0 %v421
          %453 = vmatmul.f32.gmra.mxu0 %v415
          %v454 = vpop.f32.mrf.mxu0
          %v455 = vadd.f32 0.0, %v454
          %456 = vmatmul.f32.gmra.mxu0 %v416
          %v457 = vpop.f32.mrf.mxu0
          %v458 = vadd.f32 0.0, %v457
          %459 = vdwg.mxu0
          %p460 = scmp.eq.s32.totalorder %s32, 0
          // Predicated region
          $region57: #{positionwise_ffn.1} parent=55 // pred_check
            %p461 = pneg %p460
          $region58: #{positionwise_ffn.1} parent=55 // pred_check_branch
            %463 = sbr.rel (%p461) target = $region60
          $region59: #{positionwise_ffn.1} parent=55 // pred_region
            %464 = vst [vmem:[#allocation3] sm:$0xff] %v455
            %465 = vst [vmem:[#allocation3 + $0x8] sm:$0xff] %v458
          $region60: #{positionwise_ffn.1} parent=55 // pred_fallthru
            _
          %p466 = scmp.gt.s32.totalorder %s32, 0
          // Predicated region
          $region61: #{positionwise_ffn.1} parent=55 // pred_check
            %p467 = pneg %p466
          $region62: #{positionwise_ffn.1} parent=55 // pred_check_branch
            %469 = sbr.rel (%p467) target = $region64
          $region63: #{positionwise_ffn.1} parent=55 // pred_region
            %v470 = vld [vmem:[#allocation3] sm:$0xff]
            %v471 = vld [vmem:[#allocation3 + $0x8] sm:$0xff]
            %v472 = vadd.f32 %v470, %v455
            %v473 = vadd.f32 %v471, %v458
            %474 = vst [vmem:[#allocation3] sm:$0xff] %v472
            %475 = vst [vmem:[#allocation3 + $0x8] sm:$0xff] %v473
          $region64: #{positionwise_ffn.1} parent=55 // pred_fallthru
            _
        $region56: #{positionwise_ffn.1} parent=39 // pred_fallthru
          _
        %p476 = scmp.gt.s32.totalorder %s31, 0
        // Predicated region
        $region65: #{positionwise_ffn.1} parent=39 // pred_check
          %p477 = pneg %p476
        $region66: #{positionwise_ffn.1} parent=39 // pred_check_branch
          %479 = sbr.rel (%p477) target = $region68
        $region67: #{positionwise_ffn.1} parent=39 // pred_region
          %s480 = sshra.s32 %s361, 7
          %s481 = sand.u32 %s361, 127
          %s482 = smul.addr %s480, 8
          %s483 = scalar_lea.vmem [#allocation2], %s482
          %v484 = vld [vmem:[%s483] sm:$0xff]
          %v485 = vld [vmem:[%s483 + $0x10] sm:$0xff]
          %v486 = vld [vmem:[%s318] sm:$0xff]
          %v487 = vld [vmem:[%s318 + $0x8] sm:$0xff]
          %v488 = vld [vmem:[%s318 + $0x10] sm:$0xff]
          %v489 = vld [vmem:[%s318 + $0x18] sm:$0xff]
          %v490 = vld [vmem:[%s318 + $0x20] sm:$0xff]
          %v491 = vld [vmem:[%s318 + $0x28] sm:$0xff]
          %v492 = vld [vmem:[%s318 + $0x30] sm:$0xff]
          %v493 = vld [vmem:[%s318 + $0x38] sm:$0xff]
          %v494 = vld [vmem:[%s318 + $0x40] sm:$0xff]
          %v495 = vld [vmem:[%s318 + $0x48] sm:$0xff]
          %v496 = vld [vmem:[%s318 + $0x50] sm:$0xff]
          %v497 = vld [vmem:[%s318 + $0x58] sm:$0xff]
          %v498 = vld [vmem:[%s318 + $0x60] sm:$0xff]
          %v499 = vld [vmem:[%s318 + $0x68] sm:$0xff]
          %v500 = vld [vmem:[%s318 + $0x70] sm:$0xff]
          %v501 = vld [vmem:[%s318 + $0x78] sm:$0xff]
          %502 = vmatpush.msra.mxu0 %v501
          %503 = vmatpush.msra.mxu0 %v500
          %504 = vmatpush.msra.mxu0 %v499
          %505 = vmatpush.msra.mxu0 %v498
          %506 = vmatpush.msra.mxu0 %v497
          %507 = vmatpush.msra.mxu0 %v496
          %508 = vmatpush.msra.mxu0 %v495
          %509 = vmatpush.msra.mxu0 %v494
          %510 = vmatpush.msra.mxu0 %v493
          %511 = vmatpush.msra.mxu0 %v492
          %512 = vmatpush.msra.mxu0 %v491
          %513 = vmatpush.msra.mxu0 %v490
          %514 = vmatpush.msra.mxu0 %v489
          %515 = vmatpush.msra.mxu0 %v488
          %516 = vmatpush.msra.mxu0 %v487
          %517 = vmatpush.msra.mxu0 %v486
          %518 = vmatmul.f32.gmra.mxu0 %v484
          %v519 = vpop.f32.mrf.mxu0
          %v520 = vadd.f32 0.0, %v519
          %521 = vmatmul.f32.gmra.mxu0 %v485
          %v522 = vpop.f32.mrf.mxu0
          %v523 = vadd.f32 0.0, %v522
          %524 = vdwg.mxu0
          %p525 = scmp.eq.s32.totalorder %s32, 0
          // Predicated region
          $region69: #{positionwise_ffn.1} parent=67 // pred_check
            %p526 = pneg %p525
          $region70: #{positionwise_ffn.1} parent=67 // pred_check_branch
            %528 = sbr.rel (%p526) target = $region72
          $region71: #{positionwise_ffn.1} parent=67 // pred_region
            %529 = vst [vmem:[#allocation3] sm:$0xff] %v520
            %530 = vst [vmem:[#allocation3 + $0x8] sm:$0xff] %v523
          $region72: #{positionwise_ffn.1} parent=67 // pred_fallthru
            _
          %p531 = scmp.gt.s32.totalorder %s32, 0
          // Predicated region
          $region73: #{positionwise_ffn.1} parent=67 // pred_check
            %p532 = pneg %p531
          $region74: #{positionwise_ffn.1} parent=67 // pred_check_branch
            %534 = sbr.rel (%p532) target = $region76
          $region75: #{positionwise_ffn.1} parent=67 // pred_region
            %v535 = vld [vmem:[#allocation3] sm:$0xff]
            %v536 = vld [vmem:[#allocation3 + $0x8] sm:$0xff]
            %v537 = vadd.f32 %v535, %v520
            %v538 = vadd.f32 %v536, %v523
            %539 = vst [vmem:[#allocation3] sm:$0xff] %v537
            %540 = vst [vmem:[#allocation3 + $0x8] sm:$0xff] %v538
          $region76: #{positionwise_ffn.1} parent=67 // pred_fallthru
            _
        $region68: #{positionwise_ffn.1} parent=39 // pred_fallthru
          _
        %p541 = scmp.eq.s32.totalorder %s32, 1
        // Predicated region
        $region77: #{positionwise_ffn.1} parent=39 // pred_check
          %p542 = pneg %p541
        $region78: #{positionwise_ffn.1} parent=39 // pred_check_branch
          %544 = sbr.rel (%p542) target = $region80
        $region79: #{positionwise_ffn.1} parent=39 // pred_region
          %v545 = vld [vmem:[#allocation3] sm:$0xff]
          %v546 = vld [vmem:[#allocation3 + $0x8] sm:$0xff]
          %s547 = sshra.s32 %s362, 7
          %s548 = sand.u32 %s362, 127
          %s549 = scalar_lea.vmem %s4, %s547
          %v550 = vld [vmem:[%s549] sm:$0x1]
          %v552 = vperm.slane %v550, 0
          %v554 = vadd.f32 %v545, %v552
          %v555 = vadd.f32 %v546, %v552
          %556 = vst [vmem:[%s355] sm:$0xff] %v554
          %557 = vst [vmem:[%s355 + $0x8] sm:$0xff] %v555
        $region80: #{positionwise_ffn.1} parent=39 // pred_fallthru
          _
        %s558 = sand.u32 %s180, 1
        %s559 = scalar_lea.sflag [#allocation6], %s558
        %s560 = sand.u32 %s180, 1
        %s561 = smul.addr %s560, 16
        %s562 = scalar_lea.vmem [#allocation10], %s561
        // Predicated region
        $region81: #{positionwise_ffn.1} parent=39 // pred_check
          %p563 = pneg %p190
        $region82: #{positionwise_ffn.1} parent=39 // pred_check_branch
          %565 = sbr.rel (%p563) target = $region84
        $region83: #{positionwise_ffn.1} parent=39 // pred_region
          %s566 = smul.u32 2, %s30
          %568 = vsyncadd %s559, 0
          %s569 = smul.addr %s566, 2
          %s570 = sadd.s32 %s31, %s569
          %s571 = smul.addr %s570, 8
          %s572 = scalar_lea.hbm %s5, %s571
          %s573 = sshll.u32 %s562, 4
          %s574 = int_to_ptr.vmem [resolvable:$true] %s573
          %s575 = sshll.u32 %s572, 4
          %s576 = int_to_ptr.hbm [resolvable:$true] %s575
          %581 = dma.vmem_to_hbm [thread:$0]  %s574, 256, %s576, %s559, 128, 256, 8
        $region84: #{positionwise_ffn.1} parent=39 // pred_fallthru
          _
      $region40: #{positionwise_ffn.1} parent=5 // pred_fallthru
        _
      %p582 = scmp.le.s32.totalorder 2, %s20
      // Predicated region
      $region85: #{positionwise_ffn.1} parent=5 // pred_check
        %p583 = pneg %p582
      $region86: #{positionwise_ffn.1} parent=5 // pred_check_branch
        %585 = sbr.rel (%p583) target = $region88
      $region87: #{positionwise_ffn.1} parent=5 // pred_region
        %s586 = ssub.s32 %s20, 2
        // Predicated region
        $region89: #{positionwise_ffn.1} parent=87 // pred_check
          %p587 = pneg %p196
        $region90: #{positionwise_ffn.1} parent=87 // pred_check_branch
          %589 = sbr.rel (%p587) target = $region92
        $region91: #{positionwise_ffn.1} parent=87 // pred_region
          %s590 = sand.u32 %s181, 1
          %s591 = scalar_lea.sflag [#allocation6], %s590
          %s592 = sand.u32 %s181, 1
          %s593 = smul.addr %s592, 16
          %s594 = scalar_lea.vmem [#allocation10], %s593
          %596 = dma.done %s591, 256
        $region92: #{positionwise_ffn.1} parent=87 // pred_fallthru
          _
      $region88: #{positionwise_ffn.1} parent=5 // pred_fallthru
        _
    $region6: #{positionwise_ffn.1} parent=1 // loop_footer
      %s24 = sadd.s32 1, %s20
    $region7: #{positionwise_ffn.1} parent=1 // loop_footer_branch
      %19 = sbr.rel target = $region3
    $region8: #{positionwise_ffn.1} parent=1 // loop_exit
      _
    %597 = vsyncpa [#allocation5], 1
    %s598 = scalar_lea.sflag [#allocation5], 1
    %599 = vsyncpa %s598, 1
    %600 = vsyncpa [#allocation8], 1
    %s601 = scalar_lea.sflag [#allocation8], 1
    %602 = vsyncpa %s601, 1
    %603 = vsyncpa [#allocation6], 1
    %s604 = scalar_lea.sflag [#allocation6], 1
    %605 = vsyncpa %s604, 1

</llo_original>
